<compile_context>
chip_gen: v5e
topology: v5e:2x2
jax: 0.10.0
libtpu: 0.0.40
codegen_flags: <defaults>
</compile_context>

<pallas_src>
import jax
import jax.numpy as jnp
from jax.experimental import pallas as pl
from jax.experimental.pallas import tpu as pltpu

HIDDEN_DIM = 128


def _round_up(x, m):
    return ((x + m - 1) // m) * m


def decoder_kernel(z_ref, w1_ref, b1_ref, w2_ref, b2_ref, w3_ref, b3_ref, o_ref):
    # Fused MLP hot path: 3 matmuls (f32 accumulation) + bias adds + 2 ReLUs, all in VMEM.
    cdt = w1_ref.dtype                    # matmul-operand dtype (bf16 or f32)
    z = z_ref[...].astype(cdt)            # in-kernel cast (z arrives as f32 from HBM)

    h1 = jnp.dot(z, w1_ref[...], preferred_element_type=jnp.float32) + b1_ref[...]
    h1 = jnp.maximum(h1, 0.0).astype(cdt)     # epilogue in f32, cast for next MXU pass

    h2 = jnp.dot(h1, w2_ref[...], preferred_element_type=jnp.float32) + b2_ref[...]
    h2 = jnp.maximum(h2, 0.0).astype(cdt)

    out = jnp.dot(h2, w3_ref[...], preferred_element_type=jnp.float32) + b3_ref[...]
    o_ref[...] = out.astype(o_ref.dtype)


def decoder_forward(z, params, *, tb=2048, compute_dtype=jnp.bfloat16,
                    out_dtype=jnp.float32):
    """Fused decoder MLP.

    z:       (B, E) float32, PyTorch (N, in_features) layout.
    params:  dict with w1 (E,H), b1 (1,H), w2 (H,H), b2 (1,H), w3 (H,O), b3 (1,O),
             all float32 stored transposed to (in, out).
    Returns: (B, O) in `out_dtype` (default float32, matching the PyTorch module).
    """
    B, E = z.shape
    H = params["w1"].shape[1]
    O = params["w3"].shape[1]

    # ---- batch tiling: multiple of 8, no padding copy, >=2 grid steps when possible ----
    tb_req = max(8, (int(tb) // 8) * 8)
    B_ceil = _round_up(B, 8)
    tb_eff = min(tb_req, B_ceil)
    if B_ceil >= 16:
        # Keep at least 2 grid steps so the parallel batch axis spans both v7x TCs.
        tb_eff = min(tb_eff, _round_up((B + 1) // 2, 8))
    tb_eff = max(8, tb_eff)
    grid = (pl.cdiv(B, tb_eff),)

    # Weights cast once in the wrapper (tiny); biases stay f32 for the f32 epilogue.
    w1 = params["w1"].astype(compute_dtype)
    w2 = params["w2"].astype(compute_dtype)
    w3 = params["w3"].astype(compute_dtype)
    b1 = params["b1"].astype(jnp.float32)
    b2 = params["b2"].astype(jnp.float32)
    b3 = params["b3"].astype(jnp.float32)

    cdt_size = jnp.dtype(compute_dtype).itemsize
    out_size = jnp.dtype(out_dtype).itemsize

    # ---- derive VMEM limit from the real tile footprint (v7x only has 64 MiB/TC) ----
    z_tile_bytes = tb_eff * E * 4
    out_tile_bytes = tb_eff * O * out_size
    weight_bytes = (E * H + H * H + H * O) * cdt_size + (2 * H + O) * 4
    footprint = 2 * (z_tile_bytes + out_tile_bytes + weight_bytes)   # double-buffered
    vmem_limit = int(min(max(footprint + 8 * 1024 * 1024, 16 * 1024 * 1024),
                         48 * 1024 * 1024))

    in_bytes = (B * E * 4) + weight_bytes
    out_bytes = B * O * out_size
    flops = 2 * B * (E * H + H * H + H * O)

    out = pl.pallas_call(
        decoder_kernel,
        out_shape=jax.ShapeDtypeStruct((B, O), out_dtype),
        grid_spec=pltpu.PrefetchScalarGridSpec(
            num_scalar_prefetch=0,
            grid=grid,
            in_specs=[
                pl.BlockSpec((tb_eff, E), lambda i: (i, 0)),   # z tile (streamed, f32)
                pl.BlockSpec((E, H), lambda i: (0, 0)),        # w1 (resident)
                pl.BlockSpec((1, H), lambda i: (0, 0)),        # b1
                pl.BlockSpec((H, H), lambda i: (0, 0)),        # w2
                pl.BlockSpec((1, H), lambda i: (0, 0)),        # b2
                pl.BlockSpec((H, O), lambda i: (0, 0)),        # w3 (no lane padding)
                pl.BlockSpec((1, O), lambda i: (0, 0)),        # b3
            ],
            out_specs=pl.BlockSpec((tb_eff, O), lambda i: (i, 0)),
        ),
        compiler_params=pltpu.CompilerParams(
            dimension_semantics=("parallel",),
            vmem_limit_bytes=vmem_limit,
        ),
        cost_estimate=pl.CostEstimate(
            flops=flops, bytes_accessed=in_bytes + out_bytes, transcendentals=0),
    )(z, w1, b1, w2, b2, w3, b3)

    return out


def init_params(key, embedding_dim, output_shape):
    """Deterministic init mimicking nn.Linear (uniform +/- 1/sqrt(fan_in)).
    PyTorch stores weight as (out, in); we build it that way and transpose."""
    def linear(k, fan_in, fan_out):
        kw, kb = jax.random.split(k)
        bound = 1.0 / jnp.sqrt(fan_in)
        w_pt = jax.random.uniform(kw, (fan_out, fan_in), jnp.float32, -bound, bound)
        b = jax.random.uniform(kb, (fan_out,), jnp.float32, -bound, bound)
        return w_pt.T, b.reshape(1, fan_out)  # (in, out), (1, out)

    k1, k2, k3 = jax.random.split(key, 3)
    w1, b1 = linear(k1, embedding_dim, HIDDEN_DIM)
    w2, b2 = linear(k2, HIDDEN_DIM, HIDDEN_DIM)
    w3, b3 = linear(k3, HIDDEN_DIM, output_shape)
    return {"w1": w1, "b1": b1, "w2": w2, "b2": b2, "w3": w3, "b3": b3}


def decoder_reference(z, p, compute_dtype=jnp.float32):
    """Pure-JAX reference matching the kernel's dtype behavior (operands cast,
    accumulation + epilogue in f32)."""
    cdt = compute_dtype
    h1 = jnp.dot(z.astype(cdt), p["w1"].astype(cdt),
                 preferred_element_type=jnp.float32) + p["b1"]
    h1 = jnp.maximum(h1, 0.0).astype(cdt)
    h2 = jnp.dot(h1, p["w2"].astype(cdt),
                 preferred_element_type=jnp.float32) + p["b2"]
    h2 = jnp.maximum(h2, 0.0).astype(cdt)
    out = jnp.dot(h2, p["w3"].astype(cdt),
                  preferred_element_type=jnp.float32) + p["b3"]
    return out


if __name__ == "__main__":
    key = jax.random.PRNGKey(0)
    k_param, k_z, k_z2 = jax.random.split(key, 3)

    batch = 8
    embedding_dim = 32
    output_shape = 16

    params = init_params(k_param, embedding_dim, output_shape)
    z = jax.random.normal(k_z, (batch, embedding_dim), jnp.float32)

    # 1) Strict numerical check with the f32 compute path (single grid step).
    out_f32 = decoder_forward(z, params, compute_dtype=jnp.float32)
    out_f32 = jax.block_until_ready(out_f32)
    ref_f32 = decoder_reference(z, params, compute_dtype=jnp.float32)
    assert out_f32.shape == (batch, output_shape)
    assert out_f32.dtype == jnp.float32
    assert jnp.allclose(out_f32, ref_f32, atol=1e-5, rtol=1e-5), "f32 mismatch vs reference"

    # 2) Default bf16 compute path (f32 accumulation, f32 output) — looser tolerance.
    out_bf16 = decoder_forward(z, params)  # compute_dtype=bf16 by default
    out_bf16 = jax.block_until_ready(out_bf16)
    ref_bf16 = decoder_reference(z, params, compute_dtype=jnp.bfloat16)
    assert out_bf16.shape == (batch, output_shape)
    assert jnp.allclose(out_bf16, ref_bf16, atol=5e-2, rtol=5e-2), "bf16 mismatch vs reference"

    # 3) Ragged batch with explicit small tile (multi-step parallel grid, exact tiling).
    z2 = jax.random.normal(k_z2, (40, embedding_dim), jnp.float32)
    out2 = decoder_forward(z2, params, tb=16, compute_dtype=jnp.float32)
    out2 = jax.block_until_ready(out2)
    ref2 = decoder_reference(z2, params, compute_dtype=jnp.float32)
    assert out2.shape == (40, output_shape)
    assert jnp.allclose(out2, ref2, atol=1e-5, rtol=1e-5), "ragged-batch mismatch vs reference"

    # 4) Default tile on a ragged batch: exercises the padding-free cdiv grid with a
    #    partial (masked) edge block and the >=2-grid-step cap (tb_eff=24, grid=2).
    out3 = decoder_forward(z2, params, compute_dtype=jnp.float32)
    out3 = jax.block_until_ready(out3)
    assert out3.shape == (40, output_shape)
    assert jnp.allclose(out3, ref2, atol=1e-5, rtol=1e-5), "partial-edge-block mismatch"

    print("KERNEL_OK")
</pallas_src>

<mosaic_0001>
module attributes {stable_mosaic.version = 11 : i64} {
  func.func @decoder_kernel(%arg0: i32, %arg1: memref<8x32xf32, #tpu.memory_space<vmem>>, %arg2: memref<32x128xf32, #tpu.memory_space<vmem>>, %arg3: memref<1x128xf32, #tpu.memory_space<vmem>>, %arg4: memref<128x128xf32, #tpu.memory_space<vmem>>, %arg5: memref<1x128xf32, #tpu.memory_space<vmem>>, %arg6: memref<128x16xf32, #tpu.memory_space<vmem>>, %arg7: memref<1x16xf32, #tpu.memory_space<vmem>>, %arg8: memref<8x16xf32, #tpu.memory_space<vmem>>) attributes {dimension_semantics = [#tpu.dimension_semantics<parallel>], iteration_bounds = array<i64: 1>, scalar_prefetch = 0 : i64, scratch_operands = 0 : i64, tpu.core_type = #tpu.core_type<tc>, window_params = [{transform_indices = @transform_0, window_bounds = array<i64: 8, 32>}, {pipeline_mode = #tpu.pipeline_mode<synchronous>, transform_indices = @transform_1, window_bounds = array<i64: 32, 128>}, {pipeline_mode = #tpu.pipeline_mode<synchronous>, transform_indices = @transform_2, window_bounds = array<i64: 1, 128>}, {pipeline_mode = #tpu.pipeline_mode<synchronous>, transform_indices = @transform_3, window_bounds = array<i64: 128, 128>}, {pipeline_mode = #tpu.pipeline_mode<synchronous>, transform_indices = @transform_4, window_bounds = array<i64: 1, 128>}, {pipeline_mode = #tpu.pipeline_mode<synchronous>, transform_indices = @transform_5, window_bounds = array<i64: 128, 16>}, {pipeline_mode = #tpu.pipeline_mode<synchronous>, transform_indices = @transform_6, window_bounds = array<i64: 1, 16>}, {transform_indices = @transform_7, window_bounds = array<i64: 8, 16>}]} {
    %c0 = arith.constant 0 : index
    %c0_0 = arith.constant 0 : index
    %0 = vector.load %arg1[%c0, %c0_0] : memref<8x32xf32, #tpu.memory_space<vmem>>, vector<8x32xf32>
    %c0_1 = arith.constant 0 : index
    %c0_2 = arith.constant 0 : index
    %1 = vector.load %arg2[%c0_1, %c0_2] : memref<32x128xf32, #tpu.memory_space<vmem>>, vector<32x128xf32>
    %cst = arith.constant dense<0.000000e+00> : vector<8x128xf32>
    %2 = tpu.matmul %0, %1, %cst {dimension_numbers = #tpu.dot_dimension_numbers<[1], [0], [0], [1], [0, 0, 1, 1], [], []>} : vector<8x32xf32>, vector<32x128xf32>, vector<8x128xf32> -> vector<8x128xf32>
    %c0_3 = arith.constant 0 : index
    %c0_4 = arith.constant 0 : index
    %3 = vector.load %arg3[%c0_3, %c0_4] : memref<1x128xf32, #tpu.memory_space<vmem>>, vector<1x128xf32>
    %4 = vector.broadcast %3 : vector<1x128xf32> to vector<8x128xf32>
    %5 = arith.addf %2, %4 : vector<8x128xf32>
    %cst_5 = arith.constant 0.000000e+00 : f32
    %6 = vector.broadcast %cst_5 : f32 to vector<8x128xf32>
    %7 = arith.maximumf %5, %6 : vector<8x128xf32>
    %c0_6 = arith.constant 0 : index
    %c0_7 = arith.constant 0 : index
    %8 = vector.load %arg4[%c0_6, %c0_7] : memref<128x128xf32, #tpu.memory_space<vmem>>, vector<128x128xf32>
    %cst_8 = arith.constant dense<0.000000e+00> : vector<8x128xf32>
    %9 = tpu.matmul %7, %8, %cst_8 {dimension_numbers = #tpu.dot_dimension_numbers<[1], [0], [0], [1], [0, 0, 1, 1], [], []>} : vector<8x128xf32>, vector<128x128xf32>, vector<8x128xf32> -> vector<8x128xf32>
    %c0_9 = arith.constant 0 : index
    %c0_10 = arith.constant 0 : index
    %10 = vector.load %arg5[%c0_9, %c0_10] : memref<1x128xf32, #tpu.memory_space<vmem>>, vector<1x128xf32>
    %11 = vector.broadcast %10 : vector<1x128xf32> to vector<8x128xf32>
    %12 = arith.addf %9, %11 : vector<8x128xf32>
    %cst_11 = arith.constant 0.000000e+00 : f32
    %13 = vector.broadcast %cst_11 : f32 to vector<8x128xf32>
    %14 = arith.maximumf %12, %13 : vector<8x128xf32>
    %c0_12 = arith.constant 0 : index
    %c0_13 = arith.constant 0 : index
    %15 = vector.load %arg6[%c0_12, %c0_13] : memref<128x16xf32, #tpu.memory_space<vmem>>, vector<128x16xf32>
    %cst_14 = arith.constant dense<0.000000e+00> : vector<8x16xf32>
    %16 = tpu.matmul %14, %15, %cst_14 {dimension_numbers = #tpu.dot_dimension_numbers<[1], [0], [0], [1], [0, 0, 1, 1], [], []>} : vector<8x128xf32>, vector<128x16xf32>, vector<8x16xf32> -> vector<8x16xf32>
    %c0_15 = arith.constant 0 : index
    %c0_16 = arith.constant 0 : index
    %17 = vector.load %arg7[%c0_15, %c0_16] : memref<1x16xf32, #tpu.memory_space<vmem>>, vector<1x16xf32>
    %18 = vector.broadcast %17 : vector<1x16xf32> to vector<8x16xf32>
    %19 = arith.addf %16, %18 : vector<8x16xf32>
    %c0_17 = arith.constant 0 : index
    %c0_18 = arith.constant 0 : index
    %20 = vector.load %arg8[%c0_17, %c0_18] : memref<8x16xf32, #tpu.memory_space<vmem>>, vector<8x16xf32>
    tpu.vector_store %arg8[%c0_17, %c0_18], %19 {strides = array<i32>} : memref<8x16xf32, #tpu.memory_space<vmem>>, vector<8x16xf32>,
    return
  }
  func.func @transform_0(%arg0: i32) -> (i32, i32) {
    %c0_i32 = arith.constant 0 : i32
    %c0_i32_0 = arith.constant 0 : i32
    return %arg0, %c0_i32 : i32, i32
  }
  func.func @transform_1(%arg0: i32) -> (i32, i32) {
    %c0_i32 = arith.constant 0 : i32
    %c0_i32_0 = arith.constant 0 : i32
    %c0_i32_1 = arith.constant 0 : i32
    return %c0_i32, %c0_i32_0 : i32, i32
  }
  func.func @transform_2(%arg0: i32) -> (i32, i32) {
    %c0_i32 = arith.constant 0 : i32
    %c0_i32_0 = arith.constant 0 : i32
    %c0_i32_1 = arith.constant 0 : i32
    return %c0_i32, %c0_i32_0 : i32, i32
  }
  func.func @transform_3(%arg0: i32) -> (i32, i32) {
    %c0_i32 = arith.constant 0 : i32
    %c0_i32_0 = arith.constant 0 : i32
    %c0_i32_1 = arith.constant 0 : i32
    return %c0_i32, %c0_i32_0 : i32, i32
  }
  func.func @transform_4(%arg0: i32) -> (i32, i32) {
    %c0_i32 = arith.constant 0 : i32
    %c0_i32_0 = arith.constant 0 : i32
    %c0_i32_1 = arith.constant 0 : i32
    return %c0_i32, %c0_i32_0 : i32, i32
  }
  func.func @transform_5(%arg0: i32) -> (i32, i32) {
    %c0_i32 = arith.constant 0 : i32
    %c0_i32_0 = arith.constant 0 : i32
    %c0_i32_1 = arith.constant 0 : i32
    return %c0_i32, %c0_i32_0 : i32, i32
  }
  func.func @transform_6(%arg0: i32) -> (i32, i32) {
    %c0_i32 = arith.constant 0 : i32
    %c0_i32_0 = arith.constant 0 : i32
    %c0_i32_1 = arith.constant 0 : i32
    return %c0_i32, %c0_i32_0 : i32, i32
  }
  func.func @transform_7(%arg0: i32) -> (i32, i32) {
    %c0_i32 = arith.constant 0 : i32
    %c0_i32_0 = arith.constant 0 : i32
    return %arg0, %c0_i32 : i32, i32
  }
}

</mosaic_0001>

<llo_original>
// kernel: tpu_custom_call.1
$region0: #{tpu_custom_call.1}
  #allocation0 [shape = 'u32[]', space=smem, size = 0x4, offset = 0x4, fixed_abs, tag = 'smem constant byte address 0x4 - core index']
  #allocation1 [shape = 'u32[72,128]{1,0:T(1,128)}', space=vmem, size = 0x9000, scoped, tag = 'internal scratch']
  %s0 = inlined_call_operand.vmem [shape: f32[8,32], index: 0, kind: input, shape index: {}]
  %s1 = inlined_call_operand.hbm [shape: f32[32,128], index: 1, kind: input, shape index: {}]
  %s2 = inlined_call_operand.vmem [shape: f32[1,128], index: 2, kind: input, shape index: {}]
  %s3 = inlined_call_operand.vmem [shape: f32[128,128], index: 3, kind: input, shape index: {}]
  %s4 = inlined_call_operand.vmem [shape: f32[1,128], index: 4, kind: input, shape index: {}]
  %s5 = inlined_call_operand.vmem [shape: f32[128,16], index: 5, kind: input, shape index: {}]
  %s6 = inlined_call_operand.vmem [shape: f32[1,16], index: 6, kind: input, shape index: {}]
  %s7 = inlined_call_operand.hbm [shape: f32[8,16], index: 7, kind: output, shape index: {}]
  %s8 = sld [smem:[#allocation0]]
  $region42: #{tpu_custom_call.1} parent=0
    _
  %s10 = ssub.s32 1, %s8
  %s11 = scalar_select 0, %s10, %s8
  $region1: #{tpu_custom_call.1} parent=0
    #allocation2 [shape = 'u8[16384]{0}', space=vmem, size = 0x4000, scoped, tag = 'input window, operand 1, single buffered']
    #allocation3 [shape = 's32[1]{0}', space=sflag, size = 0x4, scoped, tag = 'scoped memory for tpu_custom_call.1']
    #allocation4 [shape = 's32[1]{0}', space=sflag, size = 0x4, scoped, tag = 'scoped memory for tpu_custom_call.1']
    #allocation5 [shape = 'u8[4096]{0}', space=vmem, size = 0x1000, scoped, tag = 'output window, operand 0, single buffered']
    %12 = vsyncpa [#allocation3], 0
    %13 = vsyncpa [#allocation4], 0
    // Predicated region
    $region2: #{tpu_custom_call.1} parent=1 // pred_check
      _
    $region3: #{tpu_custom_call.1} parent=1 // pred_check_branch
      %15 = sbr.rel (0) target = $region5
    $region4: #{tpu_custom_call.1} parent=1 // pred_region
      _
    $region5: #{tpu_custom_call.1} parent=1 // pred_fallthru
      _
    // Predicated region
    $region6: #{tpu_custom_call.1} parent=1 // pred_check
      _
    $region7: #{tpu_custom_call.1} parent=1 // pred_check_branch
      %17 = sbr.rel (0) target = $region9
    $region8: #{tpu_custom_call.1} parent=1 // pred_region
      %19 = vsyncadd [#allocation3], 0
      %s20 = sshll.u32 %s1, 4
      %s21 = int_to_ptr.hbm [resolvable:$true] %s20
      %s22 = sshll.u32 [#allocation2], 4
      %s23 = int_to_ptr.vmem [resolvable:$true] %s22
      %28 = dma.hbm_to_vmem [thread:$0]  %s21, 512, %s23, [#allocation3], 128, 128, 8
    $region9: #{tpu_custom_call.1} parent=1 // pred_fallthru
      _
    // Predicated region
    $region10: #{tpu_custom_call.1} parent=1 // pred_check
      _
    $region11: #{tpu_custom_call.1} parent=1 // pred_check_branch
      %30 = sbr.rel (0) target = $region13
    $region12: #{tpu_custom_call.1} parent=1 // pred_region
      _
    $region13: #{tpu_custom_call.1} parent=1 // pred_fallthru
      _
    // Predicated region
    $region14: #{tpu_custom_call.1} parent=1 // pred_check
      _
    $region15: #{tpu_custom_call.1} parent=1 // pred_check_branch
      %32 = sbr.rel (0) target = $region17
    $region16: #{tpu_custom_call.1} parent=1 // pred_region
      _
    $region17: #{tpu_custom_call.1} parent=1 // pred_fallthru
      _
    // Predicated region
    $region18: #{tpu_custom_call.1} parent=1 // pred_check
      _
    $region19: #{tpu_custom_call.1} parent=1 // pred_check_branch
      %34 = sbr.rel (0) target = $region21
    $region20: #{tpu_custom_call.1} parent=1 // pred_region
      _
    $region21: #{tpu_custom_call.1} parent=1 // pred_fallthru
      _
    // Predicated region
    $region22: #{tpu_custom_call.1} parent=1 // pred_check
      _
    $region23: #{tpu_custom_call.1} parent=1 // pred_check_branch
      %36 = sbr.rel (0) target = $region25
    $region24: #{tpu_custom_call.1} parent=1 // pred_region
      _
    $region25: #{tpu_custom_call.1} parent=1 // pred_fallthru
      _
    // Predicated region
    $region26: #{tpu_custom_call.1} parent=1 // pred_check
      _
    $region27: #{tpu_custom_call.1} parent=1 // pred_check_branch
      %38 = sbr.rel (0) target = $region29
    $region28: #{tpu_custom_call.1} parent=1 // pred_region
      _
    $region29: #{tpu_custom_call.1} parent=1 // pred_fallthru
      _
    // Predicated region
    $region30: #{tpu_custom_call.1} parent=1 // pred_check
      _
    $region31: #{tpu_custom_call.1} parent=1 // pred_check_branch
      %40 = sbr.rel (0) target = $region33
    $region32: #{tpu_custom_call.1} parent=1 // pred_region
      %42 = dma.done [#allocation3], 512
    $region33: #{tpu_custom_call.1} parent=1 // pred_fallthru
      _
    %v43 = vld [vmem:[%s0] sm:$0xff]
    %v44 = vld [vmem:[#allocation2] sm:$0xff]
    %v45 = vld [vmem:[#allocation2 + $0x8] sm:$0xff]
    %v46 = vld [vmem:[#allocation2 + $0x10] sm:$0xff]
    %v47 = vld [vmem:[#allocation2 + $0x18] sm:$0xff]
    %v48 = vld [vmem:[%s2] sm:$0x1]
    %v50 = vperm.slane %v48, 0
    %vm52 = vcmask 261120
    %v54 = vsel %vm52, %v43, 0
    %56 = vmatpush.msra.mxu0 0.0
    %57 = vmatpush.msra.mxu0 0.0
    %58 = vmatpush.msra.mxu0 0.0
    %59 = vmatpush.msra.mxu0 0.0
    %60 = vmatpush.msra.mxu0 0.0
    %61 = vmatpush.msra.mxu0 0.0
    %62 = vmatpush.msra.mxu0 0.0
    %63 = vmatpush.msra.mxu0 0.0
    %64 = vmatpush.msra.mxu0 0.0
    %65 = vmatpush.msra.mxu0 0.0
    %66 = vmatpush.msra.mxu0 0.0
    %67 = vmatpush.msra.mxu0 0.0
    %68 = vmatpush.msra.mxu0 %v47
    %69 = vmatpush.msra.mxu0 %v46
    %70 = vmatpush.msra.mxu0 %v45
    %71 = vmatpush.msra.mxu0 %v44
    %72 = vmatmul.f32.gmra.mxu0 %v54
    %v73 = vpop.f32.mrf.mxu0
    %v74 = vadd.f32 %v50, %v73
    %75 = vdwg.mxu0
    %v76 = vmax.f32 %v74, 0.0
    %v77 = vld [vmem:[%s3] sm:$0xff]
    %v78 = vld [vmem:[%s3 + $0x8] sm:$0xff]
    %v79 = vld [vmem:[%s3 + $0x10] sm:$0xff]
    %v80 = vld [vmem:[%s3 + $0x18] sm:$0xff]
    %v81 = vld [vmem:[%s3 + $0x20] sm:$0xff]
    %v82 = vld [vmem:[%s3 + $0x28] sm:$0xff]
    %v83 = vld [vmem:[%s3 + $0x30] sm:$0xff]
    %v84 = vld [vmem:[%s3 + $0x38] sm:$0xff]
    %v85 = vld [vmem:[%s3 + $0x40] sm:$0xff]
    %v86 = vld [vmem:[%s3 + $0x48] sm:$0xff]
    %v87 = vld [vmem:[%s3 + $0x50] sm:$0xff]
    %v88 = vld [vmem:[%s3 + $0x58] sm:$0xff]
    %v89 = vld [vmem:[%s3 + $0x60] sm:$0xff]
    %v90 = vld [vmem:[%s3 + $0x68] sm:$0xff]
    %v91 = vld [vmem:[%s3 + $0x70] sm:$0xff]
    %v92 = vld [vmem:[%s3 + $0x78] sm:$0xff]
    %v93 = vld [vmem:[%s4] sm:$0x1]
    %v95 = vperm.slane %v93, 0
    %97 = vmatpush.msra.mxu0 %v92
    %98 = vmatpush.msra.mxu0 %v91
    %99 = vmatpush.msra.mxu0 %v90
    %100 = vmatpush.msra.mxu0 %v89
    %101 = vmatpush.msra.mxu0 %v88
    %102 = vmatpush.msra.mxu0 %v87
    %103 = vmatpush.msra.mxu0 %v86
    %104 = vmatpush.msra.mxu0 %v85
    %105 = vmatpush.msra.mxu0 %v84
    %106 = vmatpush.msra.mxu0 %v83
    %107 = vmatpush.msra.mxu0 %v82
    %108 = vmatpush.msra.mxu0 %v81
    %109 = vmatpush.msra.mxu0 %v80
    %110 = vmatpush.msra.mxu0 %v79
    %111 = vmatpush.msra.mxu0 %v78
    %112 = vmatpush.msra.mxu0 %v77
    %113 = vmatmul.f32.gmra.mxu0 %v76
    %v114 = vpop.f32.mrf.mxu0
    %v115 = vadd.f32 %v95, %v114
    %116 = vdwg.mxu0
    %v117 = vmax.f32 %v115, 0.0
    %v118 = vld [vmem:[%s5] sm:$0xff]
    %v119 = vld [vmem:[%s5 + $0x8] sm:$0xff]
    %v120 = vld [vmem:[%s5 + $0x10] sm:$0xff]
    %v121 = vld [vmem:[%s5 + $0x18] sm:$0xff]
    %v122 = vld [vmem:[%s5 + $0x20] sm:$0xff]
    %v123 = vld [vmem:[%s5 + $0x28] sm:$0xff]
    %v124 = vld [vmem:[%s5 + $0x30] sm:$0xff]
    %v125 = vld [vmem:[%s5 + $0x38] sm:$0xff]
    %v126 = vld [vmem:[%s5 + $0x40] sm:$0xff]
    %v127 = vld [vmem:[%s5 + $0x48] sm:$0xff]
    %v128 = vld [vmem:[%s5 + $0x50] sm:$0xff]
    %v129 = vld [vmem:[%s5 + $0x58] sm:$0xff]
    %v130 = vld [vmem:[%s5 + $0x60] sm:$0xff]
    %v131 = vld [vmem:[%s5 + $0x68] sm:$0xff]
    %v132 = vld [vmem:[%s5 + $0x70] sm:$0xff]
    %v133 = vld [vmem:[%s5 + $0x78] sm:$0xff]
    %v134 = vld [vmem:[%s6] sm:$0x1]
    %v136 = vperm.slane %v134, 0
    %138 = vmatpush.msra.mxu0 %v133
    %139 = vmatpush.msra.mxu0 %v132
    %140 = vmatpush.msra.mxu0 %v131
    %141 = vmatpush.msra.mxu0 %v130
    %142 = vmatpush.msra.mxu0 %v129
    %143 = vmatpush.msra.mxu0 %v128
    %144 = vmatpush.msra.mxu0 %v127
    %145 = vmatpush.msra.mxu0 %v126
    %146 = vmatpush.msra.mxu0 %v125
    %147 = vmatpush.msra.mxu0 %v124
    %148 = vmatpush.msra.mxu0 %v123
    %149 = vmatpush.msra.mxu0 %v122
    %150 = vmatpush.msra.mxu0 %v121
    %151 = vmatpush.msra.mxu0 %v120
    %152 = vmatpush.msra.mxu0 %v119
    %153 = vmatpush.msra.mxu0 %v118
    %154 = vmatmul.f32.gmra.mxu0 %v117
    %v155 = vpop.f32.mrf.mxu0
    %v156 = vadd.f32 %v136, %v155
    %157 = vdwg.mxu0
    %vm158 = vcmask 130048
    %159 = vst.msk [vmem:[#allocation5] sm:$0xff] %vm158, %v156
    // Predicated region
    $region34: #{tpu_custom_call.1} parent=1 // pred_check
      _
    $region35: #{tpu_custom_call.1} parent=1 // pred_check_branch
      %161 = sbr.rel (0) target = $region37
    $region36: #{tpu_custom_call.1} parent=1 // pred_region
      %163 = vsyncadd [#allocation4], 0
      %s165 = sshll.u32 [#allocation5], 4
      %s166 = int_to_ptr.vmem [resolvable:$true] %s165
      %s167 = sshll.u32 %s7, 4
      %s168 = int_to_ptr.hbm [resolvable:$true] %s167
      %170 = dma.vmem_to_hbm [thread:$0]  %s166, 128, %s168, [#allocation4]
    $region37: #{tpu_custom_call.1} parent=1 // pred_fallthru
      _
    // Predicated region
    $region38: #{tpu_custom_call.1} parent=1 // pred_check
      _
    $region39: #{tpu_custom_call.1} parent=1 // pred_check_branch
      %172 = sbr.rel (0) target = $region41
    $region40: #{tpu_custom_call.1} parent=1 // pred_region
      %174 = dma.done [#allocation4], 128
    $region41: #{tpu_custom_call.1} parent=1 // pred_fallthru
      _
    %175 = vsyncpa [#allocation3], 1
    %176 = vsyncpa [#allocation4], 1

</llo_original>
